<compile_context>
chip_gen: v7x
topology: tpu7x:2x2x1
jax: 0.10.0
libtpu: 0.0.40
codegen_flags: <defaults>
</compile_context>

<pallas_src>
import jax
import jax.numpy as jnp
from jax.experimental import pallas as pl
from jax.experimental.pallas import tpu as pltpu

NUM_JOINTS = 17
BN_EPS = 1e-5
HALO = 128          # lane-aligned halo width of the temporally padded slab


def _make_stgcn_kernel(T, V, t_tile, c_in, c_out, ksize):
    """Builds the kernel body for fixed shapes (Python ints, closed over)."""
    TV = T * V
    CHV = t_tile * V
    n_chunks = T // t_tile
    pad = (ksize - 1) // 2
    PV = pad * V
    W = TV + 2 * HALO

    def kernel(x_ref, at_ref, wg_ref, bg_ref, wts_ref, scale_ref, shift_ref,
               o_ref, xa_ref, y2p_ref, ycol_ref):
        # Per grid step (one batch element, lane-dense layouts):
        #   x_ref     : (1, C_in, T*V)    bf16  input slab
        #   at_ref    : (CHV, CHV)        bf16  I_{t_tile} (x) A_hat
        #   wg_ref    : (C_out, C_in)     bf16  gcn 1x1-conv weight
        #   bg_ref    : (C_out, 1)        f32   gcn bias
        #   wts_ref   : (C_out, K*C_out)  bf16  stacked temporal taps
        #   scale_ref : (C_out, 1)        f32   BN scale = gamma/sqrt(var+eps)
        #   shift_ref : (C_out, 1)        f32   BN shift (tcn bias folded in)
        #   o_ref     : (1, C_out, T*V)   f32   output slab (wide lane stores)
        #   xa_ref    : (C_in, T*V)       f32   scratch: graph-conv output
        #   y2p_ref   : (C_out, W)        f32   scratch: padded gcn output
        #   ycol_ref  : (K*C_out, T*V)    f32   scratch: stacked tcn windows

        # Temporal zero padding lives in the 128-lane halos of y2p_ref.
        # Re-zero every grid step: with a "parallel" grid axis each TensorCore
        # owns its own scratch, so first-iteration-only init would be unsafe.
        y2p_ref[...] = jnp.zeros((c_out, W), jnp.float32)

        # ---- 1. graph conv over joints, T-tiled so the lifted adjacency is
        #         (t_tile*V)^2 instead of (T*V)^2 (no dense I_T (x) A_hat). ---
        a_tile = at_ref[...]                                   # (CHV, CHV) bf16
        for j in range(n_chunks):                              # static, small
            lo = j * CHV
            xa_ref[:, lo:lo + CHV] = jnp.dot(
                x_ref[0, :, lo:lo + CHV], a_tile,
                preferred_element_type=jnp.float32)

        # ---- 2. gcn 1x1 conv over channels + bias: one full-width matmul ----
        bg = jnp.broadcast_to(bg_ref[...], (c_out, TV))        # hoisted
        y2 = jnp.dot(wg_ref[...], xa_ref[...].astype(jnp.bfloat16),
                     preferred_element_type=jnp.float32) + bg
        y2p_ref[:, HALO:HALO + TV] = y2                        # aligned start

        # ---- 3. temporal conv: stage the 9 shifted windows in a sublane-
        #         aligned (K*C_out, T*V) scratch, then one stacked matmul. ----
        for k in range(ksize):                                 # static 9
            s = HALO - PV + k * V
            ycol_ref[k * c_out:(k + 1) * c_out, :] = y2p_ref[:, s:s + TV]
        acc = jnp.dot(wts_ref[...], ycol_ref[...].astype(jnp.bfloat16),
                      preferred_element_type=jnp.float32)      # (C_out, T*V)

        # ---- 4. fused (tcn bias + eval-mode BN) + ReLU, lane-dense store ----
        o_ref[0, :, :] = jnp.maximum(acc * scale_ref[...] + shift_ref[...], 0.0)

    return kernel


def stgcn_block(x, A_hat, wg, bg, wt, bt, gamma, beta, run_mean, run_var,
                t_tile=8):
    """x: (N, C_in, T, V) f32. Returns (N, C_out, T, V) f32."""
    N, C_in, T, V = x.shape
    C_out, _, ksize, _ = wt.shape
    TV = T * V
    pad = (ksize - 1) // 2
    assert ksize % 2 == 1, ksize
    assert pad * V <= HALO, (pad, V)

    # Largest T tile <= t_tile that divides T; the lifted adjacency is then
    # (tt*V)^2 <= (t_tile*V)^2 irrespective of T.
    tt = max(1, min(t_tile, T))
    while T % tt:
        tt -= 1
    chv = tt * V

    # ---- plain-JAX parameter folding (once per call, outside the kernel) ----
    scale = gamma / jnp.sqrt(run_var + BN_EPS)                   # (C_out,)
    shift = beta - run_mean * scale + bt * scale                 # bt folded in
    # NOTE: bg is NOT folded here -- it must be added before the temporal zero
    # padding (boundary time steps), so it stays inside the kernel.
    a_tile = jnp.kron(jnp.eye(tt, dtype=jnp.float32),
                      A_hat.astype(jnp.float32)).astype(jnp.bfloat16)
    # temporal taps stacked: wts[o, k*C_out + c] = wt[o, c, k, 0]
    wts = jnp.transpose(wt[:, :, :, 0], (0, 2, 1)).reshape(
        C_out, ksize * C_out).astype(jnp.bfloat16)
    wg_b = wg.astype(jnp.bfloat16)
    x_flat = x.reshape(N, C_in, TV).astype(jnp.bfloat16)         # lane-dense

    # ---- explicit VMEM budget (double-buffered I/O + invariants + scratch) --
    vmem_bytes = (2 * C_in * TV * 2                  # x block, bf16, x2 buf
                  + 2 * C_out * TV * 4               # out block, f32, x2 buf
                  + 2 * chv * chv * 2                # lifted adjacency, x2 buf
                  + 2 * (C_out * C_in + C_out * ksize * C_out) * 2
                  + 2 * 3 * C_out * 4                # bg / scale / shift
                  + (C_in * TV + C_out * (TV + 2 * HALO)
                     + ksize * C_out * TV) * 4)      # f32 scratch
    vmem_limit = min(64 * 1024 * 1024,
                     max(16 * 1024 * 1024, int(1.5 * vmem_bytes)))

    flops = 2 * N * (C_in * TV * chv                 # tiled graph conv
                     + C_out * C_in * TV             # 1x1 conv
                     + C_out * ksize * C_out * TV)   # temporal conv
    bytes_accessed = (N * C_in * TV * 2 + N * C_out * TV * 4
                      + chv * chv * 2
                      + (C_out * C_in + C_out * ksize * C_out) * 2
                      + 3 * C_out * 4)
    cost = pl.CostEstimate(flops=flops, transcendentals=0,
                           bytes_accessed=bytes_accessed)

    grid_spec = pltpu.PrefetchScalarGridSpec(
        num_scalar_prefetch=0,
        grid=(N,),                                   # >= 2 steps -> megacore
        in_specs=[
            pl.BlockSpec((1, C_in, TV), lambda i: (i, 0, 0)),
            pl.BlockSpec((chv, chv), lambda i: (0, 0)),
            pl.BlockSpec((C_out, C_in), lambda i: (0, 0)),
            pl.BlockSpec((C_out, 1), lambda i: (0, 0)),
            pl.BlockSpec((C_out, ksize * C_out), lambda i: (0, 0)),
            pl.BlockSpec((C_out, 1), lambda i: (0, 0)),
            pl.BlockSpec((C_out, 1), lambda i: (0, 0)),
        ],
        out_specs=pl.BlockSpec((1, C_out, TV), lambda i: (i, 0, 0)),
        scratch_shapes=[
            pltpu.VMEM((C_in, TV), jnp.float32),
            pltpu.VMEM((C_out, TV + 2 * HALO), jnp.float32),
            pltpu.VMEM((ksize * C_out, TV), jnp.float32),
        ],
    )
    out_flat = pl.pallas_call(
        _make_stgcn_kernel(T, V, tt, C_in, C_out, ksize),
        out_shape=jax.ShapeDtypeStruct((N, C_out, TV), jnp.float32),
        grid_spec=grid_spec,
        compiler_params=pltpu.CompilerParams(
            dimension_semantics=("parallel",),
            vmem_limit_bytes=vmem_limit),
        cost_estimate=cost,
    )(x_flat, a_tile, wg_b, bg.reshape(C_out, 1), wts,
      scale.reshape(C_out, 1), shift.reshape(C_out, 1))
    return out_flat.reshape(N, C_out, T, V)


def _reference(x, A_hat, wg, bg, wt, bt, gamma, beta, run_mean, run_var):
    """Pure-JAX reference mirroring the PyTorch forward (eval-mode BN)."""
    T = x.shape[2]
    ksize = wt.shape[2]
    pad = (ksize - 1) // 2
    y = jnp.einsum('nctv,vw->nctw', x, A_hat)
    y = jnp.einsum('oc,nctv->notv', wg, y) + bg[None, :, None, None]
    yp = jnp.pad(y, ((0, 0), (0, 0), (pad, pad), (0, 0)))
    acc = jnp.zeros_like(y)
    for k in range(ksize):
        acc = acc + jnp.einsum('oc,nctv->notv', wt[:, :, k, 0],
                               yp[:, :, k:k + T, :])
    z = acc + bt[None, :, None, None]
    z = (gamma[None, :, None, None] * (z - run_mean[None, :, None, None])
         / jnp.sqrt(run_var[None, :, None, None] + BN_EPS)
         + beta[None, :, None, None])
    return jnp.maximum(z, 0.0)


if __name__ == "__main__":
    N, C_in, C_out, T, V = 2, 4, 8, 16, NUM_JOINTS
    KSIZE = 9

    key = jax.random.PRNGKey(0)
    ks = jax.random.split(key, 10)
    x = jax.random.normal(ks[0], (N, C_in, T, V), jnp.float32)

    # Deterministic, non-trivial "normalized adjacency" buffer A_hat.
    A_hat = jax.random.uniform(ks[1], (V, V), jnp.float32)
    A_hat = A_hat / jnp.sum(A_hat, axis=0, keepdims=True)

    # gcn: Conv2d(C_in, C_out, 1) -> weight (C_out, C_in), bias (C_out,)
    wg = 0.3 * jax.random.normal(ks[2], (C_out, C_in), jnp.float32)
    bg = 0.1 * jax.random.normal(ks[3], (C_out,), jnp.float32)

    # tcn conv: Conv2d(C_out, C_out, (9,1), padding=(4,0))
    wt = 0.1 * jax.random.normal(ks[4], (C_out, C_out, KSIZE, 1), jnp.float32)
    bt = 0.1 * jax.random.normal(ks[5], (C_out,), jnp.float32)

    # BatchNorm2d(C_out) parameters / running stats (eval mode)
    gamma = 1.0 + 0.1 * jax.random.normal(ks[6], (C_out,), jnp.float32)
    beta = 0.1 * jax.random.normal(ks[7], (C_out,), jnp.float32)
    run_mean = 0.1 * jax.random.normal(ks[8], (C_out,), jnp.float32)
    run_var = jax.random.uniform(ks[9], (C_out,), jnp.float32, 0.5, 1.5)

    out = stgcn_block(x, A_hat, wg, bg, wt, bt, gamma, beta, run_mean, run_var)
    out = jax.block_until_ready(out)
    assert out.shape == (N, C_out, T, V), out.shape

    # The kernel feeds the MXU bf16 operands with f32 accumulation.  Compare
    # against an f32 reference evaluated on the same bf16-rounded inputs; the
    # residual is intermediate-activation rounding only (~1e-3).
    q = lambda a: a.astype(jnp.bfloat16).astype(jnp.float32)
    ref = _reference(q(x), q(A_hat), q(wg), bg, q(wt), bt, gamma, beta,
                     run_mean, run_var)
    err = float(jnp.max(jnp.abs(out - ref)))
    assert jnp.allclose(out, ref, atol=1e-2, rtol=1e-2), err

    print("KERNEL_OK")
</pallas_src>

<mosaic_0001>
module attributes {stable_mosaic.version = 11 : i64} {
  func.func @kernel(%arg0: i32, %arg1: memref<1x4x272xbf16, #tpu.memory_space<vmem>>, %arg2: memref<136x136xbf16, #tpu.memory_space<vmem>>, %arg3: memref<8x4xbf16, #tpu.memory_space<vmem>>, %arg4: memref<8x1xf32, #tpu.memory_space<vmem>>, %arg5: memref<8x72xbf16, #tpu.memory_space<vmem>>, %arg6: memref<8x1xf32, #tpu.memory_space<vmem>>, %arg7: memref<8x1xf32, #tpu.memory_space<vmem>>, %arg8: memref<1x8x272xf32, #tpu.memory_space<vmem>>, %arg9: memref<4x272xf32, #tpu.memory_space<vmem>>, %arg10: memref<8x528xf32, #tpu.memory_space<vmem>>, %arg11: memref<72x272xf32, #tpu.memory_space<vmem>>) attributes {dimension_semantics = [#tpu.dimension_semantics<parallel>], iteration_bounds = array<i64: 2>, scalar_prefetch = 0 : i64, scratch_operands = 3 : i64, tpu.core_type = #tpu.core_type<tc>, window_params = [{transform_indices = @transform_0, window_bounds = array<i64: 1, 4, 272>}, {pipeline_mode = #tpu.pipeline_mode<synchronous>, transform_indices = @transform_1, window_bounds = array<i64: 136, 136>}, {pipeline_mode = #tpu.pipeline_mode<synchronous>, transform_indices = @transform_2, window_bounds = array<i64: 8, 4>}, {pipeline_mode = #tpu.pipeline_mode<synchronous>, transform_indices = @transform_3, window_bounds = array<i64: 8, 1>}, {pipeline_mode = #tpu.pipeline_mode<synchronous>, transform_indices = @transform_4, window_bounds = array<i64: 8, 72>}, {pipeline_mode = #tpu.pipeline_mode<synchronous>, transform_indices = @transform_5, window_bounds = array<i64: 8, 1>}, {pipeline_mode = #tpu.pipeline_mode<synchronous>, transform_indices = @transform_6, window_bounds = array<i64: 8, 1>}, {transform_indices = @transform_7, window_bounds = array<i64: 1, 8, 272>}]} {
    %cst = arith.constant 0.000000e+00 : f32
    %0 = vector.broadcast %cst : f32 to vector<8x528xf32>
    %c0 = arith.constant 0 : index
    %c0_0 = arith.constant 0 : index
    %1 = vector.load %arg10[%c0, %c0_0] : memref<8x528xf32, #tpu.memory_space<vmem>>, vector<8x528xf32>
    tpu.vector_store %arg10[%c0, %c0_0], %0 {strides = array<i32>} : memref<8x528xf32, #tpu.memory_space<vmem>>, vector<8x528xf32>,
    %c0_1 = arith.constant 0 : index
    %c0_2 = arith.constant 0 : index
    %2 = vector.load %arg2[%c0_1, %c0_2] : memref<136x136xbf16, #tpu.memory_space<vmem>>, vector<136x136xbf16>
    %c0_3 = arith.constant 0 : index
    %c0_4 = arith.constant 0 : index
    %c0_5 = arith.constant 0 : index
    %3 = vector.load %arg1[%c0_3, %c0_4, %c0_5] : memref<1x4x272xbf16, #tpu.memory_space<vmem>>, vector<1x4x136xbf16>
    %4 = vector.shape_cast %3 : vector<1x4x136xbf16> to vector<4x136xbf16>
    %cst_6 = arith.constant dense<0.000000e+00> : vector<4x136xf32>
    %5 = tpu.matmul %4, %2, %cst_6 {dimension_numbers = #tpu.dot_dimension_numbers<[1], [0], [0], [1], [0, 0, 1, 1], [], []>} : vector<4x136xbf16>, vector<136x136xbf16>, vector<4x136xf32> -> vector<4x136xf32>
    %c0_7 = arith.constant 0 : index
    %c0_8 = arith.constant 0 : index
    %6 = vector.load %arg9[%c0_7, %c0_8] : memref<4x272xf32, #tpu.memory_space<vmem>>, vector<4x136xf32>
    tpu.vector_store %arg9[%c0_7, %c0_8], %5 {strides = array<i32>} : memref<4x272xf32, #tpu.memory_space<vmem>>, vector<4x136xf32>,
    %c0_9 = arith.constant 0 : index
    %c0_10 = arith.constant 0 : index
    %c136 = arith.constant 136 : index
    %7 = vector.load %arg1[%c0_9, %c0_10, %c136] : memref<1x4x272xbf16, #tpu.memory_space<vmem>>, vector<1x4x136xbf16>
    %8 = vector.shape_cast %7 : vector<1x4x136xbf16> to vector<4x136xbf16>
    %cst_11 = arith.constant dense<0.000000e+00> : vector<4x136xf32>
    %9 = tpu.matmul %8, %2, %cst_11 {dimension_numbers = #tpu.dot_dimension_numbers<[1], [0], [0], [1], [0, 0, 1, 1], [], []>} : vector<4x136xbf16>, vector<136x136xbf16>, vector<4x136xf32> -> vector<4x136xf32>
    %c0_12 = arith.constant 0 : index
    %c136_13 = arith.constant 136 : index
    %10 = vector.load %arg9[%c0_12, %c136_13] : memref<4x272xf32, #tpu.memory_space<vmem>>, vector<4x136xf32>
    tpu.vector_store %arg9[%c0_12, %c136_13], %9 {strides = array<i32>} : memref<4x272xf32, #tpu.memory_space<vmem>>, vector<4x136xf32>,
    %c0_14 = arith.constant 0 : index
    %c0_15 = arith.constant 0 : index
    %11 = vector.load %arg4[%c0_14, %c0_15] : memref<8x1xf32, #tpu.memory_space<vmem>>, vector<8x1xf32>
    %12 = vector.shape_cast %11 : vector<8x1xf32> to vector<8x1xf32>
    %13 = vector.broadcast %12 : vector<8x1xf32> to vector<8x272xf32>
    %c0_16 = arith.constant 0 : index
    %c0_17 = arith.constant 0 : index
    %14 = vector.load %arg3[%c0_16, %c0_17] : memref<8x4xbf16, #tpu.memory_space<vmem>>, vector<8x4xbf16>
    %c0_18 = arith.constant 0 : index
    %c0_19 = arith.constant 0 : index
    %15 = vector.load %arg9[%c0_18, %c0_19] : memref<4x272xf32, #tpu.memory_space<vmem>>, vector<4x272xf32>
    %16 = arith.truncf %15 : vector<4x272xf32> to vector<4x272xbf16>
    %cst_20 = arith.constant dense<0.000000e+00> : vector<8x272xf32>
    %17 = tpu.matmul %14, %16, %cst_20 {dimension_numbers = #tpu.dot_dimension_numbers<[1], [0], [0], [1], [0, 0, 1, 1], [], []>} : vector<8x4xbf16>, vector<4x272xbf16>, vector<8x272xf32> -> vector<8x272xf32>
    %18 = arith.addf %17, %13 : vector<8x272xf32>
    %c0_21 = arith.constant 0 : index
    %c128 = arith.constant 128 : index
    %19 = vector.load %arg10[%c0_21, %c128] : memref<8x528xf32, #tpu.memory_space<vmem>>, vector<8x272xf32>
    tpu.vector_store %arg10[%c0_21, %c128], %18 {strides = array<i32>} : memref<8x528xf32, #tpu.memory_space<vmem>>, vector<8x272xf32>,
    %c0_22 = arith.constant 0 : index
    %c60 = arith.constant 60 : index
    %20 = vector.load %arg10[%c0_22, %c60] : memref<8x528xf32, #tpu.memory_space<vmem>>, vector<8x272xf32>
    %c0_23 = arith.constant 0 : index
    %c0_24 = arith.constant 0 : index
    %21 = vector.load %arg11[%c0_23, %c0_24] : memref<72x272xf32, #tpu.memory_space<vmem>>, vector<8x272xf32>
    tpu.vector_store %arg11[%c0_23, %c0_24], %20 {strides = array<i32>} : memref<72x272xf32, #tpu.memory_space<vmem>>, vector<8x272xf32>,
    %c0_25 = arith.constant 0 : index
    %c77 = arith.constant 77 : index
    %22 = vector.load %arg10[%c0_25, %c77] : memref<8x528xf32, #tpu.memory_space<vmem>>, vector<8x272xf32>
    %c8 = arith.constant 8 : index
    %c0_26 = arith.constant 0 : index
    %23 = vector.load %arg11[%c8, %c0_26] : memref<72x272xf32, #tpu.memory_space<vmem>>, vector<8x272xf32>
    tpu.vector_store %arg11[%c8, %c0_26], %22 {strides = array<i32>} : memref<72x272xf32, #tpu.memory_space<vmem>>, vector<8x272xf32>,
    %c0_27 = arith.constant 0 : index
    %c94 = arith.constant 94 : index
    %24 = vector.load %arg10[%c0_27, %c94] : memref<8x528xf32, #tpu.memory_space<vmem>>, vector<8x272xf32>
    %c16 = arith.constant 16 : index
    %c0_28 = arith.constant 0 : index
    %25 = vector.load %arg11[%c16, %c0_28] : memref<72x272xf32, #tpu.memory_space<vmem>>, vector<8x272xf32>
    tpu.vector_store %arg11[%c16, %c0_28], %24 {strides = array<i32>} : memref<72x272xf32, #tpu.memory_space<vmem>>, vector<8x272xf32>,
    %c0_29 = arith.constant 0 : index
    %c111 = arith.constant 111 : index
    %26 = vector.load %arg10[%c0_29, %c111] : memref<8x528xf32, #tpu.memory_space<vmem>>, vector<8x272xf32>
    %c24 = arith.constant 24 : index
    %c0_30 = arith.constant 0 : index
    %27 = vector.load %arg11[%c24, %c0_30] : memref<72x272xf32, #tpu.memory_space<vmem>>, vector<8x272xf32>
    tpu.vector_store %arg11[%c24, %c0_30], %26 {strides = array<i32>} : memref<72x272xf32, #tpu.memory_space<vmem>>, vector<8x272xf32>,
    %c0_31 = arith.constant 0 : index
    %c128_32 = arith.constant 128 : index
    %28 = vector.load %arg10[%c0_31, %c128_32] : memref<8x528xf32, #tpu.memory_space<vmem>>, vector<8x272xf32>
    %c32 = arith.constant 32 : index
    %c0_33 = arith.constant 0 : index
    %29 = vector.load %arg11[%c32, %c0_33] : memref<72x272xf32, #tpu.memory_space<vmem>>, vector<8x272xf32>
    tpu.vector_store %arg11[%c32, %c0_33], %28 {strides = array<i32>} : memref<72x272xf32, #tpu.memory_space<vmem>>, vector<8x272xf32>,
    %c0_34 = arith.constant 0 : index
    %c145 = arith.constant 145 : index
    %30 = vector.load %arg10[%c0_34, %c145] : memref<8x528xf32, #tpu.memory_space<vmem>>, vector<8x272xf32>
    %c40 = arith.constant 40 : index
    %c0_35 = arith.constant 0 : index
    %31 = vector.load %arg11[%c40, %c0_35] : memref<72x272xf32, #tpu.memory_space<vmem>>, vector<8x272xf32>
    tpu.vector_store %arg11[%c40, %c0_35], %30 {strides = array<i32>} : memref<72x272xf32, #tpu.memory_space<vmem>>, vector<8x272xf32>,
    %c0_36 = arith.constant 0 : index
    %c162 = arith.constant 162 : index
    %32 = vector.load %arg10[%c0_36, %c162] : memref<8x528xf32, #tpu.memory_space<vmem>>, vector<8x272xf32>
    %c48 = arith.constant 48 : index
    %c0_37 = arith.constant 0 : index
    %33 = vector.load %arg11[%c48, %c0_37] : memref<72x272xf32, #tpu.memory_space<vmem>>, vector<8x272xf32>
    tpu.vector_store %arg11[%c48, %c0_37], %32 {strides = array<i32>} : memref<72x272xf32, #tpu.memory_space<vmem>>, vector<8x272xf32>,
    %c0_38 = arith.constant 0 : index
    %c179 = arith.constant 179 : index
    %34 = vector.load %arg10[%c0_38, %c179] : memref<8x528xf32, #tpu.memory_space<vmem>>, vector<8x272xf32>
    %c56 = arith.constant 56 : index
    %c0_39 = arith.constant 0 : index
    %35 = vector.load %arg11[%c56, %c0_39] : memref<72x272xf32, #tpu.memory_space<vmem>>, vector<8x272xf32>
    tpu.vector_store %arg11[%c56, %c0_39], %34 {strides = array<i32>} : memref<72x272xf32, #tpu.memory_space<vmem>>, vector<8x272xf32>,
    %c0_40 = arith.constant 0 : index
    %c196 = arith.constant 196 : index
    %36 = vector.load %arg10[%c0_40, %c196] : memref<8x528xf32, #tpu.memory_space<vmem>>, vector<8x272xf32>
    %c64 = arith.constant 64 : index
    %c0_41 = arith.constant 0 : index
    %37 = vector.load %arg11[%c64, %c0_41] : memref<72x272xf32, #tpu.memory_space<vmem>>, vector<8x272xf32>
    tpu.vector_store %arg11[%c64, %c0_41], %36 {strides = array<i32>} : memref<72x272xf32, #tpu.memory_space<vmem>>, vector<8x272xf32>,
    %c0_42 = arith.constant 0 : index
    %c0_43 = arith.constant 0 : index
    %38 = vector.load %arg5[%c0_42, %c0_43] : memref<8x72xbf16, #tpu.memory_space<vmem>>, vector<8x72xbf16>
    %c0_44 = arith.constant 0 : index
    %c0_45 = arith.constant 0 : index
    %39 = vector.load %arg11[%c0_44, %c0_45] : memref<72x272xf32, #tpu.memory_space<vmem>>, vector<72x272xf32>
    %40 = arith.truncf %39 : vector<72x272xf32> to vector<72x272xbf16>
    %cst_46 = arith.constant dense<0.000000e+00> : vector<8x272xf32>
    %41 = tpu.matmul %38, %40, %cst_46 {dimension_numbers = #tpu.dot_dimension_numbers<[1], [0], [0], [1], [0, 0, 1, 1], [], []>} : vector<8x72xbf16>, vector<72x272xbf16>, vector<8x272xf32> -> vector<8x272xf32>
    %c0_47 = arith.constant 0 : index
    %c0_48 = arith.constant 0 : index
    %42 = vector.load %arg6[%c0_47, %c0_48] : memref<8x1xf32, #tpu.memory_space<vmem>>, vector<8x1xf32>
    %43 = vector.broadcast %42 : vector<8x1xf32> to vector<8x272xf32>
    %44 = arith.mulf %41, %43 : vector<8x272xf32>
    %c0_49 = arith.constant 0 : index
    %c0_50 = arith.constant 0 : index
    %45 = vector.load %arg7[%c0_49, %c0_50] : memref<8x1xf32, #tpu.memory_space<vmem>>, vector<8x1xf32>
    %46 = vector.broadcast %45 : vector<8x1xf32> to vector<8x272xf32>
    %47 = arith.addf %44, %46 : vector<8x272xf32>
    %cst_51 = arith.constant 0.000000e+00 : f32
    %48 = vector.broadcast %cst_51 : f32 to vector<8x272xf32>
    %49 = arith.maximumf %47, %48 : vector<8x272xf32>
    %c0_52 = arith.constant 0 : index
    %c0_53 = arith.constant 0 : index
    %c0_54 = arith.constant 0 : index
    %50 = vector.load %arg8[%c0_52, %c0_53, %c0_54] : memref<1x8x272xf32, #tpu.memory_space<vmem>>, vector<1x8x272xf32>
    %51 = vector.shape_cast %50 : vector<1x8x272xf32> to vector<8x272xf32>
    %52 = vector.shape_cast %49 : vector<8x272xf32> to vector<1x8x272xf32>
    tpu.vector_store %arg8[%c0_52, %c0_53, %c0_54], %52 {strides = array<i32>} : memref<1x8x272xf32, #tpu.memory_space<vmem>>, vector<1x8x272xf32>,
    return
  }
  func.func @transform_0(%arg0: i32) -> (i32, i32, i32) {
    %c0_i32 = arith.constant 0 : i32
    %c0_i32_0 = arith.constant 0 : i32
    %c0_i32_1 = arith.constant 0 : i32
    return %arg0, %c0_i32, %c0_i32_0 : i32, i32, i32
  }
  func.func @transform_1(%arg0: i32) -> (i32, i32) {
    %c0_i32 = arith.constant 0 : i32
    %c0_i32_0 = arith.constant 0 : i32
    %c0_i32_1 = arith.constant 0 : i32
    return %c0_i32, %c0_i32_0 : i32, i32
  }
  func.func @transform_2(%arg0: i32) -> (i32, i32) {
    %c0_i32 = arith.constant 0 : i32
    %c0_i32_0 = arith.constant 0 : i32
    %c0_i32_1 = arith.constant 0 : i32
    return %c0_i32, %c0_i32_0 : i32, i32
  }
  func.func @transform_3(%arg0: i32) -> (i32, i32) {
    %c0_i32 = arith.constant 0 : i32
    %c0_i32_0 = arith.constant 0 : i32
    %c0_i32_1 = arith.constant 0 : i32
    return %c0_i32, %c0_i32_0 : i32, i32
  }
  func.func @transform_4(%arg0: i32) -> (i32, i32) {
    %c0_i32 = arith.constant 0 : i32
    %c0_i32_0 = arith.constant 0 : i32
    %c0_i32_1 = arith.constant 0 : i32
    return %c0_i32, %c0_i32_0 : i32, i32
  }
  func.func @transform_5(%arg0: i32) -> (i32, i32) {
    %c0_i32 = arith.constant 0 : i32
    %c0_i32_0 = arith.constant 0 : i32
    %c0_i32_1 = arith.constant 0 : i32
    return %c0_i32, %c0_i32_0 : i32, i32
  }
  func.func @transform_6(%arg0: i32) -> (i32, i32) {
    %c0_i32 = arith.constant 0 : i32
    %c0_i32_0 = arith.constant 0 : i32
    %c0_i32_1 = arith.constant 0 : i32
    return %c0_i32, %c0_i32_0 : i32, i32
  }
  func.func @transform_7(%arg0: i32) -> (i32, i32, i32) {
    %c0_i32 = arith.constant 0 : i32
    %c0_i32_0 = arith.constant 0 : i32
    %c0_i32_1 = arith.constant 0 : i32
    return %arg0, %c0_i32, %c0_i32_0 : i32, i32, i32
  }
}

</mosaic_0001>

<llo_original>
// kernel: tpu_custom_call.1
$region0: #{tpu_custom_call.1}
  #allocation0 [shape = 'u32[]', space=smem, size = 0x4, offset = 0x4, fixed_abs, tag = 'smem constant byte address 0x4 - core index']
  #allocation1 [shape = 'u32[144,128]{1,0:T(1,128)}', space=vmem, size = 0x12000, scoped, tag = 'internal scratch']
  #allocation2 [shape = 'f32[4,272]{1,0:T(4,128)}', space=vmem, size = 0x1800, scoped, tag = 'scratch operand']
  #allocation3 [shape = 'f32[8,528]{1,0:T(8,128)}', space=vmem, size = 0x5000, scoped, tag = 'scratch operand']
  #allocation4 [shape = 'f32[72,272]{1,0:T(8,128)}', space=vmem, size = 0x1b000, scoped, tag = 'scratch operand']
  %s0 = inlined_call_operand.vmem [shape: bf16[2,4,272], index: 0, kind: input, shape index: {}]
  %s1 = inlined_call_operand.hbm [shape: bf16[136,136], index: 1, kind: input, shape index: {}]
  %s2 = inlined_call_operand.vmem [shape: bf16[8,4], index: 2, kind: input, shape index: {}]
  %s3 = inlined_call_operand.vmem [shape: f32[8,1], index: 3, kind: input, shape index: {}]
  %s4 = inlined_call_operand.vmem [shape: bf16[8,72], index: 4, kind: input, shape index: {}]
  %s5 = inlined_call_operand.vmem [shape: f32[8,1], index: 5, kind: input, shape index: {}]
  %s6 = inlined_call_operand.vmem [shape: f32[8,1], index: 6, kind: input, shape index: {}]
  %s7 = inlined_call_operand.hbm [shape: f32[2,8,272], index: 7, kind: output, shape index: {}]
  %s8 = sld [smem:[#allocation0]]
  $region65: #{tpu_custom_call.1} parent=0
    _
  %s10 = ssub.s32 1, %s8
  %s11 = scalar_select 0, %s10, %s8
  $region1: #{tpu_custom_call.1} parent=0
    #allocation5 [shape = 'u8[69632]{0}', space=vmem, size = 0x11000, scoped, tag = 'input window, operand 1, single buffered']
    #allocation6 [shape = 's32[2]{0}', space=sflag, size = 0x8, scoped, tag = 'scoped memory for tpu_custom_call.1']
    #allocation7 [shape = 's32[2]{0}', space=sflag, size = 0x8, scoped, tag = 'scoped memory for tpu_custom_call.1']
    #allocation8 [shape = 'u8[24576]{0}', space=vmem, size = 0x6000, scoped, tag = 'output window, operand 0']
    %12 = vsyncpa [#allocation6], 0
    %13 = vsyncpa [#allocation7], 0
    %s14 = scalar_lea.sflag [#allocation7], 1
    %15 = vsyncpa %s14, 0
    loop: start=0, step=1, limit=4
    $region2: #{tpu_custom_call.1} parent=1 // loop_pre_header
      _
    $region3: #{tpu_custom_call.1} parent=1 // loop_header
      %s17 = sphi 0, %s21
      %p18 = scmp.ge.s32.totalorder %s17, 4
      %s27 = sphi 0, %s29
      %s30 = sphi 0, %s27
      %s31 = sphi 0, %s30
      %s47 = sphi 0, %s31
      %s51 = sphi 0, %s51
      %s53 = sphi 0, %s51
      %s54 = sphi 0, %s53
      %s68 = sphi 0, %s54
      %s72 = sphi 0, %s72
      %s74 = sphi 0, %s72
      %s75 = sphi 0, %s74
      %s89 = sphi 0, %s75
      %s93 = sphi 0, %s93
      %s95 = sphi 0, %s93
      %s96 = sphi 0, %s95
      %s110 = sphi 0, %s96
      %s114 = sphi 0, %s114
      %s116 = sphi 0, %s114
      %s117 = sphi 0, %s116
      %s131 = sphi 0, %s117
      %s135 = sphi 0, %s135
      %s137 = sphi 0, %s135
      %s138 = sphi 0, %s137
      %s152 = sphi 0, %s138
      %s156 = sphi 0, %s156
      %s158 = sphi 0, %s156
      %s159 = sphi 0, %s158
      %s173 = sphi 0, %s159
      %s179 = sphi 0, %s181
      %s182 = sphi 0, %s179
      %s183 = sphi 0, %s182
      %s199 = sphi 0, %s183
    $region4: #{tpu_custom_call.1} parent=1 // loop_header_branch
      %20 = sbr.rel (%p18) target = $region8
    $region5: #{tpu_custom_call.1} parent=1 // loop_body
      %s22 = ssub.s32 %s17, 1
      %s23 = ssub.s32 %s17, 2
      %s24 = sadd.s32 %s17, 1
      %s25 = ssub.s32 %s17, %s24
      %p26 = scmp.eq.s32.totalorder %s25, 0
      %s28 = sadd.s32 %s27, 1
      %s29 = scalar_select %p26, %s27, %s28
      %p32 = pneg %p26
      %p33 = scmp.eq.s32.totalorder %s17, 1
      %p34 = por %p32, %p33
      %p35 = scmp.ne.s32.totalorder %s27, %s30
      %p36 = scmp.eq.s32.totalorder %s17, 0
      %p37 = por %p35, %p36
      %p38 = scmp.ne.s32.totalorder %s27, %s30
      %p39 = scmp.eq.s32.totalorder %s22, 1
      %p40 = por %p38, %p39
      %p41 = scmp.ne.s32.totalorder %s30, %s31
      %p42 = scmp.eq.s32.totalorder %s22, 0
      %p43 = por %p41, %p42
      %p44 = scmp.ne.s32.totalorder %s30, %s31
      %p45 = scmp.eq.s32.totalorder %s23, 1
      %p46 = por %p44, %p45
      %p48 = scmp.ne.s32.totalorder %s31, %s47
      %p49 = scmp.eq.s32.totalorder %s23, 0
      %p50 = por %p48, %p49
      %s52 = sadd.s32 %s51, 1
      %p55 = scmp.eq.s32.totalorder %s17, 1
      %p56 = scmp.ne.s32.totalorder %s51, %s53
      %p57 = scmp.eq.s32.totalorder %s17, 0
      %p58 = por %p56, %p57
      %p59 = scmp.ne.s32.totalorder %s51, %s53
      %p60 = scmp.eq.s32.totalorder %s22, 1
      %p61 = por %p59, %p60
      %p62 = scmp.ne.s32.totalorder %s53, %s54
      %p63 = scmp.eq.s32.totalorder %s22, 0
      %p64 = por %p62, %p63
      %p65 = scmp.ne.s32.totalorder %s53, %s54
      %p66 = scmp.eq.s32.totalorder %s23, 1
      %p67 = por %p65, %p66
      %p69 = scmp.ne.s32.totalorder %s54, %s68
      %p70 = scmp.eq.s32.totalorder %s23, 0
      %p71 = por %p69, %p70
      %s73 = sadd.s32 %s72, 1
      %p76 = scmp.eq.s32.totalorder %s17, 1
      %p77 = scmp.ne.s32.totalorder %s72, %s74
      %p78 = scmp.eq.s32.totalorder %s17, 0
      %p79 = por %p77, %p78
      %p80 = scmp.ne.s32.totalorder %s72, %s74
      %p81 = scmp.eq.s32.totalorder %s22, 1
      %p82 = por %p80, %p81
      %p83 = scmp.ne.s32.totalorder %s74, %s75
      %p84 = scmp.eq.s32.totalorder %s22, 0
      %p85 = por %p83, %p84
      %p86 = scmp.ne.s32.totalorder %s74, %s75
      %p87 = scmp.eq.s32.totalorder %s23, 1
      %p88 = por %p86, %p87
      %p90 = scmp.ne.s32.totalorder %s75, %s89
      %p91 = scmp.eq.s32.totalorder %s23, 0
      %p92 = por %p90, %p91
      %s94 = sadd.s32 %s93, 1
      %p97 = scmp.eq.s32.totalorder %s17, 1
      %p98 = scmp.ne.s32.totalorder %s93, %s95
      %p99 = scmp.eq.s32.totalorder %s17, 0
      %p100 = por %p98, %p99
      %p101 = scmp.ne.s32.totalorder %s93, %s95
      %p102 = scmp.eq.s32.totalorder %s22, 1
      %p103 = por %p101, %p102
      %p104 = scmp.ne.s32.totalorder %s95, %s96
      %p105 = scmp.eq.s32.totalorder %s22, 0
      %p106 = por %p104, %p105
      %p107 = scmp.ne.s32.totalorder %s95, %s96
      %p108 = scmp.eq.s32.totalorder %s23, 1
      %p109 = por %p107, %p108
      %p111 = scmp.ne.s32.totalorder %s96, %s110
      %p112 = scmp.eq.s32.totalorder %s23, 0
      %p113 = por %p111, %p112
      %s115 = sadd.s32 %s114, 1
      %p118 = scmp.eq.s32.totalorder %s17, 1
      %p119 = scmp.ne.s32.totalorder %s114, %s116
      %p120 = scmp.eq.s32.totalorder %s17, 0
      %p121 = por %p119, %p120
      %p122 = scmp.ne.s32.totalorder %s114, %s116
      %p123 = scmp.eq.s32.totalorder %s22, 1
      %p124 = por %p122, %p123
      %p125 = scmp.ne.s32.totalorder %s116, %s117
      %p126 = scmp.eq.s32.totalorder %s22, 0
      %p127 = por %p125, %p126
      %p128 = scmp.ne.s32.totalorder %s116, %s117
      %p129 = scmp.eq.s32.totalorder %s23, 1
      %p130 = por %p128, %p129
      %p132 = scmp.ne.s32.totalorder %s117, %s131
      %p133 = scmp.eq.s32.totalorder %s23, 0
      %p134 = por %p132, %p133
      %s136 = sadd.s32 %s135, 1
      %p139 = scmp.eq.s32.totalorder %s17, 1
      %p140 = scmp.ne.s32.totalorder %s135, %s137
      %p141 = scmp.eq.s32.totalorder %s17, 0
      %p142 = por %p140, %p141
      %p143 = scmp.ne.s32.totalorder %s135, %s137
      %p144 = scmp.eq.s32.totalorder %s22, 1
      %p145 = por %p143, %p144
      %p146 = scmp.ne.s32.totalorder %s137, %s138
      %p147 = scmp.eq.s32.totalorder %s22, 0
      %p148 = por %p146, %p147
      %p149 = scmp.ne.s32.totalorder %s137, %s138
      %p150 = scmp.eq.s32.totalorder %s23, 1
      %p151 = por %p149, %p150
      %p153 = scmp.ne.s32.totalorder %s138, %s152
      %p154 = scmp.eq.s32.totalorder %s23, 0
      %p155 = por %p153, %p154
      %s157 = sadd.s32 %s156, 1
      %p160 = scmp.eq.s32.totalorder %s17, 1
      %p161 = scmp.ne.s32.totalorder %s156, %s158
      %p162 = scmp.eq.s32.totalorder %s17, 0
      %p163 = por %p161, %p162
      %p164 = scmp.ne.s32.totalorder %s156, %s158
      %p165 = scmp.eq.s32.totalorder %s22, 1
      %p166 = por %p164, %p165
      %p167 = scmp.ne.s32.totalorder %s158, %s159
      %p168 = scmp.eq.s32.totalorder %s22, 0
      %p169 = por %p167, %p168
      %p170 = scmp.ne.s32.totalorder %s158, %s159
      %p171 = scmp.eq.s32.totalorder %s23, 1
      %p172 = por %p170, %p171
      %p174 = scmp.ne.s32.totalorder %s159, %s173
      %p175 = scmp.eq.s32.totalorder %s23, 0
      %p176 = por %p174, %p175
      %s177 = ssub.s32 %s17, %s24
      %p178 = scmp.eq.s32.totalorder %s177, 0
      %s180 = sadd.s32 %s179, 1
      %s181 = scalar_select %p178, %s179, %s180
      %p184 = pneg %p178
      %p185 = scmp.eq.s32.totalorder %s17, 1
      %p186 = por %p184, %p185
      %p187 = scmp.ne.s32.totalorder %s179, %s182
      %p188 = scmp.eq.s32.totalorder %s17, 0
      %p189 = por %p187, %p188
      %p190 = scmp.ne.s32.totalorder %s179, %s182
      %p191 = scmp.eq.s32.totalorder %s22, 1
      %p192 = por %p190, %p191
      %p193 = scmp.ne.s32.totalorder %s182, %s183
      %p194 = scmp.eq.s32.totalorder %s22, 0
      %p195 = por %p193, %p194
      %p196 = scmp.ne.s32.totalorder %s182, %s183
      %p197 = scmp.eq.s32.totalorder %s23, 1
      %p198 = por %p196, %p197
      %p200 = scmp.ne.s32.totalorder %s183, %s199
      %p201 = scmp.eq.s32.totalorder %s23, 0
      %p202 = por %p200, %p201
      %p203 = scmp.le.s32.totalorder 1, %s17
      %p204 = scmp.lt.s32.totalorder %s17, 3
      %p205 = pnand %p203, %p204
      %p206 = pneg %p205
      // Predicated region
      $region9: #{tpu_custom_call.1} parent=5 // pred_check
        _
      $region10: #{tpu_custom_call.1} parent=5 // pred_check_branch
        %208 = sbr.rel (%p205) target = $region12
      $region11: #{tpu_custom_call.1} parent=5 // pred_region
        %s209 = ssub.s32 %s17, 1
        // Predicated region
        $region13: #{tpu_custom_call.1} parent=11 // pred_check
          %p210 = pneg %p64
        $region14: #{tpu_custom_call.1} parent=11 // pred_check_branch
          %212 = sbr.rel (%p210) target = $region16
        $region15: #{tpu_custom_call.1} parent=11 // pred_region
          %s214 = ssub.s32 2176, 2176
          %215 = vsyncadd [#allocation6], %s214
          %s216 = sshll.u32 [#allocation5], 4
          %s217 = int_to_ptr.vmem [resolvable:$true] %s216
          %222 = dma.hbm_to_vmem [thread:$0]  %s1, 2176, %s217, [#allocation6], 128, 128, 8
        $region16: #{tpu_custom_call.1} parent=11 // pred_fallthru
          _
        // Predicated region
        $region17: #{tpu_custom_call.1} parent=11 // pred_check
          %p223 = pneg %p85
        $region18: #{tpu_custom_call.1} parent=11 // pred_check_branch
          %225 = sbr.rel (%p223) target = $region20
        $region19: #{tpu_custom_call.1} parent=11 // pred_region
          _
        $region20: #{tpu_custom_call.1} parent=11 // pred_fallthru
          _
        // Predicated region
        $region21: #{tpu_custom_call.1} parent=11 // pred_check
          %p226 = pneg %p106
        $region22: #{tpu_custom_call.1} parent=11 // pred_check_branch
          %228 = sbr.rel (%p226) target = $region24
        $region23: #{tpu_custom_call.1} parent=11 // pred_region
          _
        $region24: #{tpu_custom_call.1} parent=11 // pred_fallthru
          _
        // Predicated region
        $region25: #{tpu_custom_call.1} parent=11 // pred_check
          %p229 = pneg %p127
        $region26: #{tpu_custom_call.1} parent=11 // pred_check_branch
          %231 = sbr.rel (%p229) target = $region28
        $region27: #{tpu_custom_call.1} parent=11 // pred_region
          _
        $region28: #{tpu_custom_call.1} parent=11 // pred_fallthru
          _
        // Predicated region
        $region29: #{tpu_custom_call.1} parent=11 // pred_check
          %p232 = pneg %p148
        $region30: #{tpu_custom_call.1} parent=11 // pred_check_branch
          %234 = sbr.rel (%p232) target = $region32
        $region31: #{tpu_custom_call.1} parent=11 // pred_region
          _
        $region32: #{tpu_custom_call.1} parent=11 // pred_fallthru
          _
        // Predicated region
        $region33: #{tpu_custom_call.1} parent=11 // pred_check
          %p235 = pneg %p169
        $region34: #{tpu_custom_call.1} parent=11 // pred_check_branch
          %237 = sbr.rel (%p235) target = $region36
        $region35: #{tpu_custom_call.1} parent=11 // pred_region
          _
        $region36: #{tpu_custom_call.1} parent=11 // pred_fallthru
          _
      $region12: #{tpu_custom_call.1} parent=5 // pred_fallthru
        _
      %p238 = scmp.lt.s32.totalorder %s17, 2
      // Predicated region
      $region37: #{tpu_custom_call.1} parent=5 // pred_check
        %p239 = pneg %p238
      $region38: #{tpu_custom_call.1} parent=5 // pred_check_branch
        %241 = sbr.rel (%p239) target = $region40
      $region39: #{tpu_custom_call.1} parent=5 // pred_region
        // Predicated region
        $region41: #{tpu_custom_call.1} parent=39 // pred_check
          %p242 = pneg %p37
        $region42: #{tpu_custom_call.1} parent=39 // pred_check_branch
          %244 = sbr.rel (%p242) target = $region44
        $region43: #{tpu_custom_call.1} parent=39 // pred_region
          %p245 = scmp.lt.s32.totalorder %s17, 1
          %s246 = scalar_select %p245, %s17, 1
          %s247 = smul.addr %s246, 3
          %s248 = smul.addr %s247, 2
          %s249 = scalar_lea.vmem %s0, %s248
        $region44: #{tpu_custom_call.1} parent=39 // pred_fallthru
          _
      $region40: #{tpu_custom_call.1} parent=5 // pred_fallthru
        _
      %p250 = scmp.le.s32.totalorder 1, %s17
      %p251 = scmp.lt.s32.totalorder %s17, 3
      %p252 = pnand %p250, %p251
      %p253 = pneg %p252
      // Predicated region
      $region45: #{tpu_custom_call.1} parent=5 // pred_check
        _
      $region46: #{tpu_custom_call.1} parent=5 // pred_check_branch
        %255 = sbr.rel (%p252) target = $region48
      $region47: #{tpu_custom_call.1} parent=5 // pred_region
        %s256 = ssub.s32 %s17, 1
        // Predicated region
        $region49: #{tpu_custom_call.1} parent=47 // pred_check
          %p257 = pneg %p64
        $region50: #{tpu_custom_call.1} parent=47 // pred_check_branch
          %259 = sbr.rel (%p257) target = $region52
        $region51: #{tpu_custom_call.1} parent=47 // pred_region
          %260 = dma.done [#allocation6], 2176
        $region52: #{tpu_custom_call.1} parent=47 // pred_fallthru
          _
        %p261 = scmp.lt.s32.totalorder %s22, 1
        %s262 = scalar_select %p261, %s22, 1
        %s263 = smul.addr %s262, 3
        %s264 = smul.addr %s263, 2
        %s265 = scalar_lea.vmem %s0, %s264
        %p266 = pneg %p43
        %p267 = pneg %p40
        %p268 = pneg %p64
        %p269 = pneg %p61
        %p270 = pneg %p85
        %p271 = pneg %p82
        %p272 = pneg %p106
        %p273 = pneg %p103
        %p274 = pneg %p127
        %p275 = pneg %p124
        %p276 = pneg %p148
        %p277 = pneg %p145
        %p278 = pneg %p169
        %p279 = pneg %p166
        %p280 = pneg %p195
        %p281 = pneg %p192
        %s282 = sand.u32 %s182, 1
        %s283 = scalar_lea.sflag [#allocation7], %s282
        %s284 = sand.u32 %s182, 1
        %s285 = smul.addr %s284, 24
        %s286 = scalar_lea.vmem [#allocation8], %s285
        %p287 = scmp.lt.s32.totalorder %s22, 1
        %s288 = scalar_select %p287, %s22, 1
        %s289 = smul.addr %s288, 3
        %s290 = smul.addr %s289, 2
        %s291 = scalar_lea.vmem %s0, %s290
        %293 = vst [vmem:[#allocation3] sm:$0xff] 0.0
        %294 = vst [vmem:[#allocation3 + $0x8] sm:$0xff] 0.0
        %295 = vst [vmem:[#allocation3 + $0x10] sm:$0xff] 0.0
        %296 = vst [vmem:[#allocation3 + $0x18] sm:$0xff] 0.0
        %vm297 = vcmask 130048
        %298 = vst.msk [vmem:[#allocation3 + $0x20] sm:$0xff] %vm297, 0.0
        %v299 = vld [vmem:[#allocation5] sm:$0xff]
        %v300 = vld [vmem:[#allocation5 + $0x8] sm:$0xff]
        %v301 = vld [vmem:[#allocation5 + $0x10] sm:$0xff]
        %v302 = vld [vmem:[#allocation5 + $0x18] sm:$0xff]
        %v303 = vld [vmem:[#allocation5 + $0x20] sm:$0xff]
        %v304 = vld [vmem:[#allocation5 + $0x28] sm:$0xff]
        %v305 = vld [vmem:[#allocation5 + $0x30] sm:$0xff]
        %v306 = vld [vmem:[#allocation5 + $0x38] sm:$0xff]
        %v307 = vld [vmem:[#allocation5 + $0x40] sm:$0xff]
        %v308 = vld [vmem:[#allocation5 + $0x48] sm:$0xff]
        %v309 = vld [vmem:[#allocation5 + $0x50] sm:$0xff]
        %v310 = vld [vmem:[#allocation5 + $0x58] sm:$0xff]
        %v311 = vld [vmem:[#allocation5 + $0x60] sm:$0xff]
        %v312 = vld [vmem:[#allocation5 + $0x68] sm:$0xff]
        %v313 = vld [vmem:[#allocation5 + $0x70] sm:$0xff]
        %v314 = vld [vmem:[#allocation5 + $0x78] sm:$0xff]
        %v315 = vld [vmem:[#allocation5 + $0x80] sm:$0xff]
        %v316 = vld [vmem:[%s291] sm:$0xf]
        %v319 = vunpack.c.l.s4 1983009808
        %v320 = vunpack.c.0.s8 %v319
        %v321 = vlaneseq
        %v322 = vshrl.u32 %v321, 7
        %v323 = vsub.s32 %v320, %v322
        %v324 = vrot.slane %v316, %v323
        %v325 = vcombine.high %v324, %v324
        %v344 = vunpack.c.l.b16 %v299
        %v345 = vunpack.c.h.b16 %v299
        %v346 = vunpack.c.l.b16 %v300
        %v347 = vunpack.c.h.b16 %v300
        %v348 = vunpack.c.l.b16 %v301
        %v349 = vunpack.c.h.b16 %v301
        %v350 = vunpack.c.l.b16 %v302
        %v351 = vunpack.c.h.b16 %v302
        %v352 = vunpack.c.l.b16 %v303
        %v353 = vunpack.c.h.b16 %v303
        %v354 = vunpack.c.l.b16 %v304
        %v355 = vunpack.c.h.b16 %v304
        %v356 = vunpack.c.l.b16 %v305
        %v357 = vunpack.c.h.b16 %v305
        %v358 = vunpack.c.l.b16 %v306
        %v359 = vunpack.c.h.b16 %v306
        %v360 = vunpack.c.l.b16 %v307
        %v361 = vunpack.c.h.b16 %v307
        %v362 = vunpack.c.l.b16 %v308
        %v363 = vunpack.c.h.b16 %v308
        %v364 = vunpack.c.l.b16 %v309
        %v365 = vunpack.c.h.b16 %v309
        %v366 = vunpack.c.l.b16 %v310
        %v367 = vunpack.c.h.b16 %v310
        %v368 = vunpack.c.l.b16 %v311
        %v369 = vunpack.c.h.b16 %v311
        %v370 = vunpack.c.l.b16 %v312
        %v371 = vunpack.c.h.b16 %v312
        %v372 = vunpack.c.l.b16 %v313
        %v373 = vunpack.c.h.b16 %v313
        %v374 = vunpack.c.l.b16 %v314
        %v375 = vunpack.c.h.b16 %v314
        %v376 = vunpack.c.l.b16 %v315
        %v377 = vunpack.c.h.b16 %v315
        %v378 = vpack.c.b16 %v346, %v344
        %v379 = vpack.c.b16 %v347, %v345
        %v380 = vpack.c.b16 %v350, %v348
        %v381 = vpack.c.b16 %v351, %v349
        %v382 = vpack.c.b16 %v354, %v352
        %v383 = vpack.c.b16 %v355, %v353
        %v384 = vpack.c.b16 %v358, %v356
        %v385 = vpack.c.b16 %v359, %v357
        %v386 = vpack.c.b16 %v362, %v360
        %v387 = vpack.c.b16 %v363, %v361
        %v388 = vpack.c.b16 %v366, %v364
        %v389 = vpack.c.b16 %v367, %v365
        %v390 = vpack.c.b16 %v370, %v368
        %v391 = vpack.c.b16 %v371, %v369
        %v392 = vpack.c.b16 %v374, %v372
        %v393 = vpack.c.b16 %v375, %v373
        %v394 = vpack.c.b16 %v376, %v376
        %v395 = vpack.c.b16 %v377, %v377
        %vm412 = vcmask 64512
        %v414 = vsel %vm412, %v325, 0
        %vm416 = vcmask 1043456
        %v418 = vsel %vm416, %v394, 0
        %v421 = vsel %vm416, %v395, 0
        %423 = vmatprep.subr.bf16.mxu0 %v379
        %424 = vmatpush1.bf16.msra.mxu0 %v378
        %425 = vmatprep.subr.bf16.mxu0 %v381
        %426 = vmatpush1.bf16.msra.mxu0 %v380
        %427 = vmatprep.subr.bf16.mxu0 %v383
        %428 = vmatpush1.bf16.msra.mxu0 %v382
        %429 = vmatprep.subr.bf16.mxu0 %v385
        %430 = vmatpush1.bf16.msra.mxu0 %v384
        %431 = vmatprep.subr.bf16.mxu0 %v387
        %432 = vmatpush1.bf16.msra.mxu0 %v386
        %433 = vmatprep.subr.bf16.mxu0 %v389
        %434 = vmatpush1.bf16.msra.mxu0 %v388
        %435 = vmatprep.subr.bf16.mxu0 %v391
        %436 = vmatpush1.bf16.msra.mxu0 %v390
        %437 = vmatprep.subr.bf16.mxu0 %v393
        %438 = vmatpush1.bf16.msra.mxu0 %v392
        %439 = vmatprep.subr.bf16.mxu0 %v421
        %440 = vmatpush1.bf16.msra.mxu0 %v418
        %441 = vmatprep.subr.bf16.mxu0 0
        %442 = vmatpush1.bf16.msra.mxu0 0
        %443 = vmatprep.subr.bf16.mxu0 0
        %444 = vmatpush1.bf16.msra.mxu0 0
        %445 = vmatprep.subr.bf16.mxu0 0
        %446 = vmatpush1.bf16.msra.mxu0 0
        %447 = vmatprep.subr.bf16.mxu0 0
        %448 = vmatpush1.bf16.msra.mxu0 0
        %449 = vmatprep.subr.bf16.mxu0 0
        %450 = vmatpush1.bf16.msra.mxu0 0
        %451 = vmatprep.subr.bf16.mxu0 0
        %452 = vmatpush1.bf16.msra.mxu0 0
        %453 = vmatprep.subr.bf16.mxu0 0
        %454 = vmatpush1.bf16.msra.mxu0 0
        %455 = vmatprep.mubr.bf16.mxu0 %v414
        %456 = vmatmul.mubr.bf16.gmra.mrb[0].mxu0 %v324
        %v457 = vpop.f32.mrb[0].mxu0
        %v458 = vadd.f32 0.0, %v457
        %v459 = vpop.f32.mrb[0].mxu0
        %v460 = vadd.f32 0.0, %v459
        %v461 = vpop.f32.mrb[0].mxu0
        %v462 = vpop.f32.mrb[0].mxu0
        %463 = vdwg.mxu0
        %v466 = vcombine.low %v458, %v460
        %vm468 = vcmask 64516
        %vm469 = vmor %vm468, %vm416
        %470 = vst.msk [vmem:[#allocation2] sm:$0xff] %vm469, %v466
        %v471 = vld [vmem:[%s291 + $0x2] sm:$0xf]
        %v474 = vunpack.c.l.s4 1983009808
        %v475 = vunpack.c.0.s8 %v474
        %v476 = vlaneseq
        %v477 = vshrl.u32 %v476, 7
        %v478 = vsub.s32 %v475, %v477
        %v479 = vrot.slane %v471, %v478
        %v480 = vcombine.high %v479, %v479
        %481 = vrot.lane.b32.xlu0 %v479, 120
        %v482 = vpop.permute.xlu0 %481
        %483 = vrot.lane.b32.xlu0 %v480, 120
        %v484 = vpop.permute.xlu0 %483
        %vm485 = vcmask 982016
        %v486 = vsel %vm485, %v482, %v484
        %v489 = vsel %vm412, %v484, 0
        %491 = vmatprep.subr.bf16.mxu0 %v379
        %492 = vmatpush1.bf16.msra.mxu0 %v378
        %493 = vmatprep.subr.bf16.mxu0 %v381
        %494 = vmatpush1.bf16.msra.mxu0 %v380
        %495 = vmatprep.subr.bf16.mxu0 %v383
        %496 = vmatpush1.bf16.msra.mxu0 %v382
        %497 = vmatprep.subr.bf16.mxu0 %v385
        %498 = vmatpush1.bf16.msra.mxu0 %v384
        %499 = vmatprep.subr.bf16.mxu0 %v387
        %500 = vmatpush1.bf16.msra.mxu0 %v386
        %501 = vmatprep.subr.bf16.mxu0 %v389
        %502 = vmatpush1.bf16.msra.mxu0 %v388
        %503 = vmatprep.subr.bf16.mxu0 %v391
        %504 = vmatpush1.bf16.msra.mxu0 %v390
        %505 = vmatprep.subr.bf16.mxu0 %v393
        %506 = vmatpush1.bf16.msra.mxu0 %v392
        %507 = vmatprep.subr.bf16.mxu0 %v421
        %508 = vmatpush1.bf16.msra.mxu0 %v418
        %509 = vmatprep.subr.bf16.mxu0 0
        %510 = vmatpush1.bf16.msra.mxu0 0
        %511 = vmatprep.subr.bf16.mxu0 0
        %512 = vmatpush1.bf16.msra.mxu0 0
        %513 = vmatprep.subr.bf16.mxu0 0
        %514 = vmatpush1.bf16.msra.mxu0 0
        %515 = vmatprep.subr.bf16.mxu0 0
        %516 = vmatpush1.bf16.msra.mxu0 0
        %517 = vmatprep.subr.bf16.mxu0 0
        %518 = vmatpush1.bf16.msra.mxu0 0
        %519 = vmatprep.subr.bf16.mxu0 0
        %520 = vmatpush1.bf16.msra.mxu0 0
        %521 = vmatprep.subr.bf16.mxu0 0
        %522 = vmatpush1.bf16.msra.mxu0 0
        %523 = vmatprep.mubr.bf16.mxu0 %v489
        %524 = vmatmul.mubr.bf16.gmra.mrb[0].mxu0 %v486
        %v525 = vpop.f32.mrb[0].mxu0
        %v526 = vadd.f32 0.0, %v525
        %v527 = vpop.f32.mrb[0].mxu0
        %v528 = vadd.f32 0.0, %v527
        %v529 = vpop.f32.mrb[0].mxu0
        %v530 = vpop.f32.mrb[0].mxu0
        %531 = vdwg.mxu0
        %v534 = vcombine.low %v526, %v528
        %535 = vrot.lane.b32.xlu0 %v534, 8
        %v536 = vpop.permute.xlu0 %535
        %v537 = vrot.slane %v536, 4
        %v538 = vsel %vm412, %v537, %v536
        %vm540 = vcmask 1043520
        %vm541 = vcmask 130052
        %vm542 = vmor %vm541, %vm540
        %543 = vst.msk [vmem:[#allocation2 + $0x4] sm:$0xff] %vm542, %v538
        %v544 = vld [vmem:[%s3] sm:$0xff]
        %546 = vset.pattern.permute.xlu0 0
        %547 = vperm.xlu0 %546, %v544
        %v548 = vpop.permute.xlu0 %547
        %v550 = vld [vmem:[%s2] sm:$0xf]
        %v551 = vld [vmem:[#allocation2] sm:$0xff]
        %v552 = vld [vmem:[#allocation2 + $0x8] sm:$0xf]
        %v554 = vcombine.high %v551, %v551
        %v556 = vpack.c.bf16 %v551, %v551
        %v557 = vpack.c.bf16 %v554, %v554
        %v558 = vpack.c.bf16 %v552, %v552
        %vm559 = vcmask 31744
        %v561 = vsel %vm559, %v550, 0
        %vm563 = vcmask 1041408
        %v565 = vsel %vm563, %v556, 0
        %v568 = vsel %vm563, %v557, 0
        %v571 = vsel %vm563, %v558, 0
        %573 = vmatprep.subr.bf16.mxu0 %v568
        %574 = vmatpush1.bf16.msra.mxu0 %v565
        %575 = vmatprep.subr.bf16.mxu0 0
        %576 = vmatpush1.bf16.msra.mxu0 0
        %577 = vmatprep.subr.bf16.mxu0 0
        %578 = vmatpush1.bf16.msra.mxu0 0
        %579 = vmatprep.subr.bf16.mxu0 0
        %580 = vmatpush1.bf16.msra.mxu0 0
        %581 = vmatprep.subr.bf16.mxu0 0
        %582 = vmatpush1.bf16.msra.mxu0 0
        %583 = vmatprep.subr.bf16.mxu0 0
        %584 = vmatpush1.bf16.msra.mxu0 0
        %585 = vmatprep.subr.bf16.mxu0 0
        %586 = vmatpush1.bf16.msra.mxu0 0
        %587 = vmatprep.subr.bf16.mxu0 0
        %588 = vmatpush1.bf16.msra.mxu0 0
        %589 = vmatprep.subr.bf16.mxu0 0
        %590 = vmatpush1.bf16.msra.mxu0 0
        %591 = vmatprep.subr.bf16.mxu0 0
        %592 = vmatpush1.bf16.msra.mxu0 0
        %593 = vmatprep.subr.bf16.mxu0 0
        %594 = vmatpush1.bf16.msra.mxu0 0
        %595 = vmatprep.subr.bf16.mxu0 0
        %596 = vmatpush1.bf16.msra.mxu0 0
        %597 = vmatprep.subr.bf16.mxu0 0
        %598 = vmatpush1.bf16.msra.mxu0 0
        %599 = vmatprep.subr.bf16.mxu0 0
        %600 = vmatpush1.bf16.msra.mxu0 0
        %601 = vmatprep.subr.bf16.mxu0 0
        %602 = vmatpush1.bf16.msra.mxu0 0
        %603 = vmatprep.subr.bf16.mxu0 0
        %604 = vmatpush1.bf16.msra.mxu0 0
        %605 = vmatprep.mubr.bf16.mxu0 0
        %606 = vmatmul.mubr.bf16.gmra.mrb[0].mxu0 %v561
        %v607 = vpop.f32.mrb[0].mxu0
        %v608 = vadd.f32 %v548, %v607
        %v609 = vpop.f32.mrb[0].mxu0
        %v610 = vadd.f32 %v548, %v609
        %v611 = vpop.f32.mrb[0].mxu0
        %v612 = vpop.f32.mrb[0].mxu0
        %613 = vdwg.mxu0
        %614 = vmatprep.subr.bf16.mxu0 0
        %615 = vmatpush1.bf16.msra.mxu0 %v571
        %616 = vmatprep.subr.bf16.mxu0 0
        %617 = vmatpush1.bf16.msra.mxu0 0
        %618 = vmatprep.subr.bf16.mxu0 0
        %619 = vmatpush1.bf16.msra.mxu0 0
        %620 = vmatprep.subr.bf16.mxu0 0
        %621 = vmatpush1.bf16.msra.mxu0 0
        %622 = vmatprep.subr.bf16.mxu0 0
        %623 = vmatpush1.bf16.msra.mxu0 0
        %624 = vmatprep.subr.bf16.mxu0 0
        %625 = vmatpush1.bf16.msra.mxu0 0
        %626 = vmatprep.subr.bf16.mxu0 0
        %627 = vmatpush1.bf16.msra.mxu0 0
        %628 = vmatprep.subr.bf16.mxu0 0
        %629 = vmatpush1.bf16.msra.mxu0 0
        %630 = vmatprep.subr.bf16.mxu0 0
        %631 = vmatpush1.bf16.msra.mxu0 0
        %632 = vmatprep.subr.bf16.mxu0 0
        %633 = vmatpush1.bf16.msra.mxu0 0
        %634 = vmatprep.subr.bf16.mxu0 0
        %635 = vmatpush1.bf16.msra.mxu0 0
        %636 = vmatprep.subr.bf16.mxu0 0
        %637 = vmatpush1.bf16.msra.mxu0 0
        %638 = vmatprep.subr.bf16.mxu0 0
        %639 = vmatpush1.bf16.msra.mxu0 0
        %640 = vmatprep.subr.bf16.mxu0 0
        %641 = vmatpush1.bf16.msra.mxu0 0
        %642 = vmatprep.subr.bf16.mxu0 0
        %643 = vmatpush1.bf16.msra.mxu0 0
        %644 = vmatprep.subr.bf16.mxu0 0
        %645 = vmatpush1.bf16.msra.mxu0 0
        %646 = vmatprep.mubr.bf16.mxu0 0
        %647 = vmatmul.mubr.bf16.gmra.mrb[0].mxu0 %v561
        %v648 = vpop.f32.mrb[0].mxu0
        %v649 = vadd.f32 %v548, %v648
        %v650 = vpop.f32.mrb[0].mxu0
        %v651 = vpop.f32.mrb[0].mxu0
        %v652 = vpop.f32.mrb[0].mxu0
        %653 = vdwg.mxu0
        %654 = vst [vmem:[#allocation3 + $0x8] sm:$0xff] %v608
        %655 = vst [vmem:[#allocation3 + $0x10] sm:$0xff] %v610
        %656 = vst.msk [vmem:[#allocation3 + $0x18] sm:$0xff] %vm297, %v649
        %v657 = vld [vmem:[#allocation3] sm:$0xff]
        %v658 = vld [vmem:[#allocation3 + $0x8] sm:$0xff]
        %v659 = vld [vmem:[#allocation3 + $0x10] sm:$0xff]
        %663 = vrot.lane.b32.xlu0 %v657, 68
        %v664 = vpop.permute.xlu0 %663
        %665 = vrot.lane.b32.xlu0 %v658, 68
        %v666 = vpop.permute.xlu0 %665
        %667 = vrot.lane.b32.xlu0 %v659, 68
        %v668 = vpop.permute.xlu0 %667
        %vm669 = vcmask 556032
        %v670 = vsel %vm669, %v664, %v666
        %v671 = vsel %vm669, %v666, %v668
        %675 = vst [vmem:[#allocation4] sm:$0xff] %v670
        %676 = vst [vmem:[#allocation4 + $0x8] sm:$0xff] %v671
        %677 = vst.msk [vmem:[#allocation4 + $0x10] sm:$0xff] %vm297, %v668
        %v678 = vld [vmem:[#allocation3] sm:$0xff]
        %v679 = vld [vmem:[#allocation3 + $0x8] sm:$0xff]
        %v680 = vld [vmem:[#allocation3 + $0x10] sm:$0xff]
        %684 = vrot.lane.b32.xlu0 %v678, 51
        %v685 = vpop.permute.xlu0 %684
        %686 = vrot.lane.b32.xlu0 %v679, 51
        %v687 = vpop.permute.xlu0 %686
        %688 = vrot.lane.b32.xlu0 %v680, 51
        %v689 = vpop.permute.xlu0 %688
        %vm690 = vcmask 416768
        %v691 = vsel %vm690, %v685, %v687
        %v692 = vsel %vm690, %v687, %v689
        %696 = vst [vmem:[#allocation4 + $0x18] sm:$0xff] %v691
        %697 = vst [vmem:[#allocation4 + $0x20] sm:$0xff] %v692
        %698 = vst.msk [vmem:[#allocation4 + $0x28] sm:$0xff] %vm297, %v689
        %v699 = vld [vmem:[#allocation3] sm:$0xff]
        %v700 = vld [vmem:[#allocation3 + $0x8] sm:$0xff]
        %v701 = vld [vmem:[#allocation3 + $0x10] sm:$0xff]
        %705 = vrot.lane.b32.xlu0 %v699, 34
        %v706 = vpop.permute.xlu0 %705
        %707 = vrot.lane.b32.xlu0 %v700, 34
        %v708 = vpop.permute.xlu0 %707
        %709 = vrot.lane.b32.xlu0 %v701, 34
        %v710 = vpop.permute.xlu0 %709
        %vm711 = vcmask 277504
        %v712 = vsel %vm711, %v706, %v708
        %v713 = vsel %vm711, %v708, %v710
        %717 = vst [vmem:[#allocation4 + $0x30] sm:$0xff] %v712
        %718 = vst [vmem:[#allocation4 + $0x38] sm:$0xff] %v713
        %719 = vst.msk [vmem:[#allocation4 + $0x40] sm:$0xff] %vm297, %v710
        %v720 = vld [vmem:[#allocation3] sm:$0xff]
        %v721 = vld [vmem:[#allocation3 + $0x8] sm:$0xff]
        %v722 = vld [vmem:[#allocation3 + $0x10] sm:$0xff]
        %726 = vrot.lane.b32.xlu0 %v720, 17
        %v727 = vpop.permute.xlu0 %726
        %728 = vrot.lane.b32.xlu0 %v721, 17
        %v729 = vpop.permute.xlu0 %728
        %730 = vrot.lane.b32.xlu0 %v722, 17
        %v731 = vpop.permute.xlu0 %730
        %vm732 = vcmask 138240
        %v733 = vsel %vm732, %v727, %v729
        %v734 = vsel %vm732, %v729, %v731
        %738 = vst [vmem:[#allocation4 + $0x48] sm:$0xff] %v733
        %739 = vst [vmem:[#allocation4 + $0x50] sm:$0xff] %v734
        %740 = vst.msk [vmem:[#allocation4 + $0x58] sm:$0xff] %vm297, %v731
        %v741 = vld [vmem:[#allocation3 + $0x8] sm:$0xff]
        %v742 = vld [vmem:[#allocation3 + $0x10] sm:$0xff]
        %v743 = vld [vmem:[#allocation3 + $0x18] sm:$0xff]
        %744 = vst [vmem:[#allocation4 + $0x60] sm:$0xff] %v741
        %745 = vst [vmem:[#allocation4 + $0x68] sm:$0xff] %v742
        %746 = vst.msk [vmem:[#allocation4 + $0x70] sm:$0xff] %vm297, %v743
        %v747 = vld [vmem:[#allocation3 + $0x8] sm:$0xff]
        %v748 = vld [vmem:[#allocation3 + $0x10] sm:$0xff]
        %v749 = vld [vmem:[#allocation3 + $0x18] sm:$0xff]
        %753 = vrot.lane.b32.xlu0 %v747, 111
        %v754 = vpop.permute.xlu0 %753
        %755 = vrot.lane.b32.xlu0 %v748, 111
        %v756 = vpop.permute.xlu0 %755
        %757 = vrot.lane.b32.xlu0 %v749, 111
        %v758 = vpop.permute.xlu0 %757
        %vm759 = vcmask 908288
        %v760 = vsel %vm759, %v754, %v756
        %v761 = vsel %vm759, %v756, %v758
        %765 = vst [vmem:[#allocation4 + $0x78] sm:$0xff] %v760
        %766 = vst [vmem:[#allocation4 + $0x80] sm:$0xff] %v761
        %767 = vst.msk [vmem:[#allocation4 + $0x88] sm:$0xff] %vm297, %v758
        %v768 = vld [vmem:[#allocation3 + $0x8] sm:$0xff]
        %v769 = vld [vmem:[#allocation3 + $0x10] sm:$0xff]
        %v770 = vld [vmem:[#allocation3 + $0x18] sm:$0xff]
        %774 = vrot.lane.b32.xlu0 %v768, 94
        %v775 = vpop.permute.xlu0 %774
        %776 = vrot.lane.b32.xlu0 %v769, 94
        %v777 = vpop.permute.xlu0 %776
        %778 = vrot.lane.b32.xlu0 %v770, 94
        %v779 = vpop.permute.xlu0 %778
        %vm780 = vcmask 769024
        %v781 = vsel %vm780, %v775, %v777
        %v782 = vsel %vm780, %v777, %v779
        %786 = vst [vmem:[#allocation4 + $0x90] sm:$0xff] %v781
        %787 = vst [vmem:[#allocation4 + $0x98] sm:$0xff] %v782
        %788 = vst.msk [vmem:[#allocation4 + $0xa0] sm:$0xff] %vm297, %v779
        %v789 = vld [vmem:[#allocation3 + $0x8] sm:$0xff]
        %v790 = vld [vmem:[#allocation3 + $0x10] sm:$0xff]
        %v791 = vld [vmem:[#allocation3 + $0x18] sm:$0xff]
        %795 = vrot.lane.b32.xlu0 %v789, 77
        %v796 = vpop.permute.xlu0 %795
        %797 = vrot.lane.b32.xlu0 %v790, 77
        %v798 = vpop.permute.xlu0 %797
        %799 = vrot.lane.b32.xlu0 %v791, 77
        %v800 = vpop.permute.xlu0 %799
        %vm801 = vcmask 629760
        %v802 = vsel %vm801, %v796, %v798
        %v803 = vsel %vm801, %v798, %v800
        %807 = vst [vmem:[#allocation4 + $0xa8] sm:$0xff] %v802
        %808 = vst [vmem:[#allocation4 + $0xb0] sm:$0xff] %v803
        %809 = vst.msk [vmem:[#allocation4 + $0xb8] sm:$0xff] %vm297, %v800
        %v810 = vld [vmem:[#allocation3 + $0x8] sm:$0xff]
        %v811 = vld [vmem:[#allocation3 + $0x10] sm:$0xff]
        %v812 = vld [vmem:[#allocation3 + $0x18] sm:$0xff]
        %816 = vrot.lane.b32.xlu0 %v810, 60
        %v817 = vpop.permute.xlu0 %816
        %818 = vrot.lane.b32.xlu0 %v811, 60
        %v819 = vpop.permute.xlu0 %818
        %820 = vrot.lane.b32.xlu0 %v812, 60
        %v821 = vpop.permute.xlu0 %820
        %vm822 = vcmask 490496
        %v823 = vsel %vm822, %v817, %v819
        %v824 = vsel %vm822, %v819, %v821
        %828 = vst [vmem:[#allocation4 + $0xc0] sm:$0xff] %v823
        %829 = vst [vmem:[#allocation4 + $0xc8] sm:$0xff] %v824
        %830 = vst.msk [vmem:[#allocation4 + $0xd0] sm:$0xff] %vm297, %v821
        %v831 = vld [vmem:[%s4] sm:$0xf]
        %v832 = vld [vmem:[#allocation4] sm:$0xff]
        %v833 = vld [vmem:[#allocation4 + $0x8] sm:$0xff]
        %v834 = vld [vmem:[#allocation4 + $0x10] sm:$0xff]
        %v835 = vld [vmem:[#allocation4 + $0x18] sm:$0xff]
        %v836 = vld [vmem:[#allocation4 + $0x20] sm:$0xff]
        %v837 = vld [vmem:[#allocation4 + $0x28] sm:$0xff]
        %v838 = vld [vmem:[#allocation4 + $0x30] sm:$0xff]
        %v839 = vld [vmem:[#allocation4 + $0x38] sm:$0xff]
        %v840 = vld [vmem:[#allocation4 + $0x40] sm:$0xff]
        %v841 = vld [vmem:[#allocation4 + $0x48] sm:$0xff]
        %v842 = vld [vmem:[#allocation4 + $0x50] sm:$0xff]
        %v843 = vld [vmem:[#allocation4 + $0x58] sm:$0xff]
        %v844 = vld [vmem:[#allocation4 + $0x60] sm:$0xff]
        %v845 = vld [vmem:[#allocation4 + $0x68] sm:$0xff]
        %v846 = vld [vmem:[#allocation4 + $0x70] sm:$0xff]
        %v847 = vld [vmem:[#allocation4 + $0x78] sm:$0xff]
        %v848 = vld [vmem:[#allocation4 + $0x80] sm:$0xff]
        %v849 = vld [vmem:[#allocation4 + $0x88] sm:$0xff]
        %v850 = vld [vmem:[#allocation4 + $0x90] sm:$0xff]
        %v851 = vld [vmem:[#allocation4 + $0x98] sm:$0xff]
        %v852 = vld [vmem:[#allocation4 + $0xa0] sm:$0xff]
        %v853 = vld [vmem:[#allocation4 + $0xa8] sm:$0xff]
        %v854 = vld [vmem:[#allocation4 + $0xb0] sm:$0xff]
        %v855 = vld [vmem:[#allocation4 + $0xb8] sm:$0xff]
        %v856 = vld [vmem:[#allocation4 + $0xc0] sm:$0xff]
        %v857 = vld [vmem:[#allocation4 + $0xc8] sm:$0xff]
        %v858 = vld [vmem:[#allocation4 + $0xd0] sm:$0xff]
        %v859 = vpack.c.bf16 %v835, %v832
        %v860 = vpack.c.bf16 %v836, %v833
        %v861 = vpack.c.bf16 %v837, %v834
        %v862 = vpack.c.bf16 %v841, %v838
        %v863 = vpack.c.bf16 %v842, %v839
        %v864 = vpack.c.bf16 %v843, %v840
        %v865 = vpack.c.bf16 %v847, %v844
        %v866 = vpack.c.bf16 %v848, %v845
        %v867 = vpack.c.bf16 %v849, %v846
        %v868 = vpack.c.bf16 %v853, %v850
        %v869 = vpack.c.bf16 %v854, %v851
        %v870 = vpack.c.bf16 %v855, %v852
        %v871 = vpack.c.bf16 %v856, %v856
        %v872 = vpack.c.bf16 %v857, %v857
        %v873 = vpack.c.bf16 %v858, %v858
        %vm874 = vcmask 588800
        %v876 = vsel %vm874, %v831, 0
        %v879 = vsel %vm416, %v871, 0
        %v882 = vsel %vm416, %v872, 0
        %v885 = vsel %vm416, %v873, 0
        %887 = vmatprep.subr.bf16.mxu0 %v860
        %888 = vmatpush1.bf16.msra.mxu0 %v859
        %889 = vmatprep.subr.bf16.mxu0 %v863
        %890 = vmatpush1.bf16.msra.mxu0 %v862
        %891 = vmatprep.subr.bf16.mxu0 %v866
        %892 = vmatpush1.bf16.msra.mxu0 %v865
        %893 = vmatprep.subr.bf16.mxu0 %v869
        %894 = vmatpush1.bf16.msra.mxu0 %v868
        %895 = vmatprep.subr.bf16.mxu0 %v882
        %896 = vmatpush1.bf16.msra.mxu0 %v879
        %897 = vmatprep.subr.bf16.mxu0 0
        %898 = vmatpush1.bf16.msra.mxu0 0
        %899 = vmatprep.subr.bf16.mxu0 0
        %900 = vmatpush1.bf16.msra.mxu0 0
        %901 = vmatprep.subr.bf16.mxu0 0
        %902 = vmatpush1.bf16.msra.mxu0 0
        %903 = vmatprep.subr.bf16.mxu0 0
        %904 = vmatpush1.bf16.msra.mxu0 0
        %905 = vmatprep.subr.bf16.mxu0 0
        %906 = vmatpush1.bf16.msra.mxu0 0
        %907 = vmatprep.subr.bf16.mxu0 0
        %908 = vmatpush1.bf16.msra.mxu0 0
        %909 = vmatprep.subr.bf16.mxu0 0
        %910 = vmatpush1.bf16.msra.mxu0 0
        %911 = vmatprep.subr.bf16.mxu0 0
        %912 = vmatpush1.bf16.msra.mxu0 0
        %913 = vmatprep.subr.bf16.mxu0 0
        %914 = vmatpush1.bf16.msra.mxu0 0
        %915 = vmatprep.subr.bf16.mxu0 0
        %916 = vmatpush1.bf16.msra.mxu0 0
        %917 = vmatprep.subr.bf16.mxu0 0
        %918 = vmatpush1.bf16.msra.mxu0 0
        %919 = vmatprep.mubr.bf16.mxu0 0
        %920 = vmatmul.mubr.bf16.gmra.mrb[0].mxu0 %v876
        %v921 = vpop.f32.mrb[0].mxu0
        %v922 = vadd.f32 0.0, %v921
        %v923 = vpop.f32.mrb[0].mxu0
        %v924 = vadd.f32 0.0, %v923
        %v925 = vpop.f32.mrb[0].mxu0
        %v926 = vpop.f32.mrb[0].mxu0
        %927 = vdwg.mxu0
        %928 = vmatprep.subr.bf16.mxu0 0
        %929 = vmatpush1.bf16.msra.mxu0 %v861
        %930 = vmatprep.subr.bf16.mxu0 0
        %931 = vmatpush1.bf16.msra.mxu0 %v864
        %932 = vmatprep.subr.bf16.mxu0 0
        %933 = vmatpush1.bf16.msra.mxu0 %v867
        %934 = vmatprep.subr.bf16.mxu0 0
        %935 = vmatpush1.bf16.msra.mxu0 %v870
        %936 = vmatprep.subr.bf16.mxu0 0
        %937 = vmatpush1.bf16.msra.mxu0 %v885
        %938 = vmatprep.subr.bf16.mxu0 0
        %939 = vmatpush1.bf16.msra.mxu0 0
        %940 = vmatprep.subr.bf16.mxu0 0
        %941 = vmatpush1.bf16.msra.mxu0 0
        %942 = vmatprep.subr.bf16.mxu0 0
        %943 = vmatpush1.bf16.msra.mxu0 0
        %944 = vmatprep.subr.bf16.mxu0 0
        %945 = vmatpush1.bf16.msra.mxu0 0
        %946 = vmatprep.subr.bf16.mxu0 0
        %947 = vmatpush1.bf16.msra.mxu0 0
        %948 = vmatprep.subr.bf16.mxu0 0
        %949 = vmatpush1.bf16.msra.mxu0 0
        %950 = vmatprep.subr.bf16.mxu0 0
        %951 = vmatpush1.bf16.msra.mxu0 0
        %952 = vmatprep.subr.bf16.mxu0 0
        %953 = vmatpush1.bf16.msra.mxu0 0
        %954 = vmatprep.subr.bf16.mxu0 0
        %955 = vmatpush1.bf16.msra.mxu0 0
        %956 = vmatprep.subr.bf16.mxu0 0
        %957 = vmatpush1.bf16.msra.mxu0 0
        %958 = vmatprep.subr.bf16.mxu0 0
        %959 = vmatpush1.bf16.msra.mxu0 0
        %960 = vmatprep.mubr.bf16.mxu0 0
        %961 = vmatmul.mubr.bf16.gmra.mrb[0].mxu0 %v876
        %v962 = vpop.f32.mrb[0].mxu0
        %v963 = vadd.f32 0.0, %v962
        %v964 = vpop.f32.mrb[0].mxu0
        %v965 = vpop.f32.mrb[0].mxu0
        %v966 = vpop.f32.mrb[0].mxu0
        %967 = vdwg.mxu0
        %v968 = vld [vmem:[%s5] sm:$0xff]
        %970 = vset.pattern.permute.xlu0 0
        %971 = vperm.xlu0 %970, %v968
        %v972 = vpop.permute.xlu0 %971
        %v974 = vmul.f32 %v922, %v972
        %v975 = vmul.f32 %v924, %v972
        %v976 = vmul.f32 %v963, %v972
        %v977 = vld [vmem:[%s6] sm:$0xff]
        %979 = vset.pattern.permute.xlu0 0
        %980 = vperm.xlu0 %979, %v977
        %v981 = vpop.permute.xlu0 %980
        %v983 = vadd.f32 %v974, %v981
        %v984 = vadd.f32 %v975, %v981
        %v985 = vadd.f32 %v976, %v981
        %v986 = vmax.f32 %v983, 0.0
        %v987 = vmax.f32 %v984, 0.0
        %v988 = vmax.f32 %v985, 0.0
        %989 = vst [vmem:[%s286] sm:$0xff] %v986
        %990 = vst [vmem:[%s286 + $0x8] sm:$0xff] %v987
        %991 = vst.msk [vmem:[%s286 + $0x10] sm:$0xff] %vm297, %v988
        %s992 = sand.u32 %s182, 1
        %s993 = scalar_lea.sflag [#allocation7], %s992
        %s994 = sand.u32 %s182, 1
        %s995 = smul.addr %s994, 24
        %s996 = scalar_lea.vmem [#allocation8], %s995
        // Predicated region
        $region53: #{tpu_custom_call.1} parent=47 // pred_check
          %p997 = pneg %p192
        $region54: #{tpu_custom_call.1} parent=47 // pred_check_branch
          %999 = sbr.rel (%p997) target = $region56
        $region55: #{tpu_custom_call.1} parent=47 // pred_region
          %s1001 = ssub.s32 384, 384
          %1002 = vsyncadd %s993, %s1001
          %s1003 = smul.addr %s22, 3
          %s1004 = smul.addr %s1003, 128
          %s1005 = scalar_lea.hbm %s7, %s1004
          %s1007 = sshll.u32 %s996, 4
          %s1008 = int_to_ptr.vmem [resolvable:$true] %s1007
          %1010 = dma.vmem_to_hbm [thread:$0]  %s1008, 384, %s1005, %s993
        $region56: #{tpu_custom_call.1} parent=47 // pred_fallthru
          _
      $region48: #{tpu_custom_call.1} parent=5 // pred_fallthru
        _
      %p1011 = scmp.le.s32.totalorder 2, %s17
      // Predicated region
      $region57: #{tpu_custom_call.1} parent=5 // pred_check
        %p1012 = pneg %p1011
      $region58: #{tpu_custom_call.1} parent=5 // pred_check_branch
        %1014 = sbr.rel (%p1012) target = $region60
      $region59: #{tpu_custom_call.1} parent=5 // pred_region
        %s1015 = ssub.s32 %s17, 2
        // Predicated region
        $region61: #{tpu_custom_call.1} parent=59 // pred_check
          %p1016 = pneg %p198
        $region62: #{tpu_custom_call.1} parent=59 // pred_check_branch
          %1018 = sbr.rel (%p1016) target = $region64
        $region63: #{tpu_custom_call.1} parent=59 // pred_region
          %s1019 = sand.u32 %s183, 1
          %s1020 = scalar_lea.sflag [#allocation7], %s1019
          %s1021 = sand.u32 %s183, 1
          %s1022 = smul.addr %s1021, 24
          %s1023 = scalar_lea.vmem [#allocation8], %s1022
          %1024 = dma.done %s1020, 384
        $region64: #{tpu_custom_call.1} parent=59 // pred_fallthru
          _
      $region60: #{tpu_custom_call.1} parent=5 // pred_fallthru
        _
    $region6: #{tpu_custom_call.1} parent=1 // loop_footer
      %s21 = sadd.s32 1, %s17
    $region7: #{tpu_custom_call.1} parent=1 // loop_footer_branch
      %16 = sbr.rel target = $region3
    $region8: #{tpu_custom_call.1} parent=1 // loop_exit
      _
    %1025 = vsyncpa [#allocation6], 1
    %s1026 = scalar_lea.sflag [#allocation6], 1
    %1027 = vsyncpa %s1026, 1
    %1028 = vsyncpa [#allocation7], 1
    %s1029 = scalar_lea.sflag [#allocation7], 1
    %1030 = vsyncpa %s1029, 1

</llo_original>
